<compile_context>
chip_gen: v7x
topology: tpu7x:2x2x1
jax: 0.10.0
libtpu: 0.0.40
codegen_flags: <defaults>
</compile_context>

<pallas_src>
import jax
import jax.numpy as jnp
from jax.experimental import pallas as pl
from jax.experimental.pallas import tpu as pltpu


def _modulate_kernel(x_ref, scale_ref, shift_ref, o_ref):
    # out = x * scale + shift
    #   scale already contains the "+1.0" (folded in the wrapper),
    #   scale/shift are [TM, 1] and broadcast along the spatial lane axis.
    x = x_ref[...].astype(jnp.float32)
    o_ref[...] = (x * scale_ref[...] + shift_ref[...]).astype(o_ref.dtype)


def _pick_tile(dim, unit, max_tile):
    """Largest legal block size along one axis.

    Full-extent blocks are always legal; otherwise use the biggest multiple of
    the hardware tiling unit that fits the budget (edge blocks handled by the
    pl.cdiv grid).
    """
    if dim <= max_tile:
        return dim
    return max(unit, (max_tile // unit) * unit)


def apply_style_affine(x, latent, weight, bias, *, w_lrmul, b_lrmul,
                       tm_max=256, tn_max=2048):
    B, C, H, W = x.shape
    two_c = weight.shape[0]
    assert two_c == 2 * C

    # ---- Style FC (plain JAX, per perf feedback): fold lrmuls into params.
    wT = (weight.astype(jnp.float32) * w_lrmul).T                 # [L, 2C]
    b = bias.astype(jnp.float32) * b_lrmul                        # [2C]
    style = latent.astype(jnp.float32) @ wT + b                   # [B, 2C]
    style = jnp.where(style >= 0.0, style, 0.2 * style)           # leaky_relu(0.2)

    # style.view(B, 2, C, 1, 1): first C columns -> scale, last C -> shift.
    scale = style[:, :C].reshape(B * C, 1) + 1.0                  # "+1" folded here
    shift = style[:, C:].reshape(B * C, 1)

    # ---- Tiled, pipelined modulation kernel on x as [B*C, H*W].
    R, S = B * C, H * W
    x2d = x.reshape(R, S)

    # sublane tiling unit depends on dtype packing (f32: 8, bf16: 16, int8/fp8: 32)
    sub = {4: 8, 2: 16, 1: 32}.get(jnp.dtype(x.dtype).itemsize, 8)
    tm = _pick_tile(R, sub, tm_max)
    tn = _pick_tile(S, 128, tn_max)
    grid = (pl.cdiv(R, tm), pl.cdiv(S, tn))   # spatial axis innermost ->
                                              # scale/shift stay VMEM-resident

    out2d = pl.pallas_call(
        _modulate_kernel,
        out_shape=jax.ShapeDtypeStruct((R, S), x.dtype),
        grid=grid,
        in_specs=[
            pl.BlockSpec((tm, tn), lambda i, j: (i, j)),   # x tile
            pl.BlockSpec((tm, 1), lambda i, j: (i, 0)),    # scale (no re-DMA over j)
            pl.BlockSpec((tm, 1), lambda i, j: (i, 0)),    # shift (no re-DMA over j)
        ],
        out_specs=pl.BlockSpec((tm, tn), lambda i, j: (i, j)),
        compiler_params=pltpu.CompilerParams(
            dimension_semantics=("parallel", "parallel")),
    )(x2d, scale, shift)

    return out2d.reshape(B, C, H, W)


if __name__ == "__main__":
    # Small shapes consistent with the module's forward.
    B, C, H, W = 2, 4, 16, 16
    L = 32  # latent_size

    # FC(latent_size, channels*2, gain=1.0, use_wscale=True), lrmul=1.0
    use_wscale = True
    lrmul = 1.0
    gain = 1.0
    he_std = gain * (L ** (-0.5))
    if use_wscale:
        init_std = 1.0 / lrmul
        w_lrmul = he_std * lrmul
    else:
        init_std = he_std / lrmul
        w_lrmul = lrmul
    b_lrmul = lrmul

    key = jax.random.PRNGKey(0)
    kx, kl, kw, kb = jax.random.split(key, 4)
    x = jax.random.normal(kx, (B, C, H, W), dtype=jnp.float32)
    latent = jax.random.normal(kl, (B, L), dtype=jnp.float32)
    weight = jax.random.normal(kw, (2 * C, L), dtype=jnp.float32) * init_std
    bias = jax.random.normal(kb, (2 * C,), dtype=jnp.float32) * 0.1

    def ref_fn(x_in):
        # Pure-JAX reference (same math as the PyTorch module).
        s = latent.astype(jnp.float32) @ (weight.astype(jnp.float32) * w_lrmul).T
        s = s + bias.astype(jnp.float32) * b_lrmul
        s = jnp.where(s >= 0.0, s, 0.2 * s)                 # leaky_relu(0.2)
        s = s.reshape(B, 2, C, 1, 1)
        out = x_in.astype(jnp.float32) * (s[:, 0] + 1.0) + s[:, 1]
        return out.astype(x_in.dtype)

    # f32 path
    out = jax.block_until_ready(
        apply_style_affine(x, latent, weight, bias, w_lrmul=w_lrmul, b_lrmul=b_lrmul))
    ref = ref_fn(x)
    assert out.shape == (B, C, H, W)
    assert jnp.allclose(out, ref, atol=1e-5, rtol=1e-5)

    # bf16 I/O path (halves HBM traffic for the mem-bound modulation).
    x_bf = x.astype(jnp.bfloat16)
    out_bf = jax.block_until_ready(
        apply_style_affine(x_bf, latent, weight, bias, w_lrmul=w_lrmul, b_lrmul=b_lrmul))
    ref_bf = ref_fn(x_bf)
    assert out_bf.dtype == jnp.bfloat16
    assert jnp.allclose(out_bf.astype(jnp.float32), ref_bf.astype(jnp.float32),
                        atol=3e-2, rtol=3e-2)

    print("KERNEL_OK")
</pallas_src>

<mosaic_0001>
module attributes {stable_mosaic.version = 11 : i64} {
  func.func @_modulate_kernel(%arg0: i32, %arg1: i32, %arg2: memref<8x256xf32, #tpu.memory_space<vmem>>, %arg3: memref<8x1xf32, #tpu.memory_space<vmem>>, %arg4: memref<8x1xf32, #tpu.memory_space<vmem>>, %arg5: memref<8x256xf32, #tpu.memory_space<vmem>>) attributes {dimension_semantics = [#tpu.dimension_semantics<parallel>, #tpu.dimension_semantics<parallel>], iteration_bounds = array<i64: 1, 1>, scalar_prefetch = 0 : i64, scratch_operands = 0 : i64, tpu.core_type = #tpu.core_type<tc>, window_params = [{transform_indices = @transform_0, window_bounds = array<i64: 8, 256>}, {transform_indices = @transform_1, window_bounds = array<i64: 8, 1>}, {transform_indices = @transform_2, window_bounds = array<i64: 8, 1>}, {transform_indices = @transform_3, window_bounds = array<i64: 8, 256>}]} {
    %c0 = arith.constant 0 : index
    %c0_0 = arith.constant 0 : index
    %0 = vector.load %arg2[%c0, %c0_0] : memref<8x256xf32, #tpu.memory_space<vmem>>, vector<8x256xf32>
    %c0_1 = arith.constant 0 : index
    %c0_2 = arith.constant 0 : index
    %1 = vector.load %arg3[%c0_1, %c0_2] : memref<8x1xf32, #tpu.memory_space<vmem>>, vector<8x1xf32>
    %2 = vector.broadcast %1 : vector<8x1xf32> to vector<8x256xf32>
    %3 = arith.mulf %0, %2 : vector<8x256xf32>
    %c0_3 = arith.constant 0 : index
    %c0_4 = arith.constant 0 : index
    %4 = vector.load %arg4[%c0_3, %c0_4] : memref<8x1xf32, #tpu.memory_space<vmem>>, vector<8x1xf32>
    %5 = vector.broadcast %4 : vector<8x1xf32> to vector<8x256xf32>
    %6 = arith.addf %3, %5 : vector<8x256xf32>
    %c0_5 = arith.constant 0 : index
    %c0_6 = arith.constant 0 : index
    %7 = vector.load %arg5[%c0_5, %c0_6] : memref<8x256xf32, #tpu.memory_space<vmem>>, vector<8x256xf32>
    tpu.vector_store %arg5[%c0_5, %c0_6], %6 {strides = array<i32>} : memref<8x256xf32, #tpu.memory_space<vmem>>, vector<8x256xf32>,
    return
  }
  func.func @transform_0(%arg0: i32, %arg1: i32) -> (i32, i32) {
    %c0_i32 = arith.constant 0 : i32
    return %arg0, %arg1 : i32, i32
  }
  func.func @transform_1(%arg0: i32, %arg1: i32) -> (i32, i32) {
    %c0_i32 = arith.constant 0 : i32
    %c0_i32_0 = arith.constant 0 : i32
    return %arg0, %c0_i32 : i32, i32
  }
  func.func @transform_2(%arg0: i32, %arg1: i32) -> (i32, i32) {
    %c0_i32 = arith.constant 0 : i32
    %c0_i32_0 = arith.constant 0 : i32
    return %arg0, %c0_i32 : i32, i32
  }
  func.func @transform_3(%arg0: i32, %arg1: i32) -> (i32, i32) {
    %c0_i32 = arith.constant 0 : i32
    return %arg0, %arg1 : i32, i32
  }
}

</mosaic_0001>

<llo_original>
// kernel: tpu_custom_call.1
$region0: #{tpu_custom_call.1}
  #allocation0 [shape = 'u32[]', space=smem, size = 0x4, offset = 0x4, fixed_abs, tag = 'smem constant byte address 0x4 - core index']
  #allocation1 [shape = 'u32[144,128]{1,0:T(1,128)}', space=vmem, size = 0x12000, scoped, tag = 'internal scratch']
  %s0 = inlined_call_operand.vmem [shape: f32[8,256], index: 0, kind: input, shape index: {}]
  %s1 = inlined_call_operand.vmem [shape: f32[8,1], index: 1, kind: input, shape index: {}]
  %s2 = inlined_call_operand.vmem [shape: f32[8,1], index: 2, kind: input, shape index: {}]
  %s3 = inlined_call_operand.hbm [shape: f32[8,256], index: 3, kind: output, shape index: {}]
  %s4 = sld [smem:[#allocation0]]
  $region22: #{tpu_custom_call.1} parent=0
    _
  %s6 = ssub.s32 1, %s4
  %s7 = scalar_select 0, %s6, %s4
  $region1: #{tpu_custom_call.1} parent=0
    #allocation2 [shape = 'u8[8192]{0}', space=vmem, size = 0x2000, scoped, tag = 'output window, operand 0, single buffered']
    #allocation3 [shape = 's32[1]{0}', space=sflag, size = 0x4, scoped, tag = 'scoped memory for tpu_custom_call.1']
    %8 = vsyncpa [#allocation3], 0
    // Predicated region
    $region2: #{tpu_custom_call.1} parent=1 // pred_check
      _
    $region3: #{tpu_custom_call.1} parent=1 // pred_check_branch
      %10 = sbr.rel (0) target = $region5
    $region4: #{tpu_custom_call.1} parent=1 // pred_region
      _
    $region5: #{tpu_custom_call.1} parent=1 // pred_fallthru
      _
    // Predicated region
    $region6: #{tpu_custom_call.1} parent=1 // pred_check
      _
    $region7: #{tpu_custom_call.1} parent=1 // pred_check_branch
      %12 = sbr.rel (0) target = $region9
    $region8: #{tpu_custom_call.1} parent=1 // pred_region
      _
    $region9: #{tpu_custom_call.1} parent=1 // pred_fallthru
      _
    // Predicated region
    $region10: #{tpu_custom_call.1} parent=1 // pred_check
      _
    $region11: #{tpu_custom_call.1} parent=1 // pred_check_branch
      %14 = sbr.rel (0) target = $region13
    $region12: #{tpu_custom_call.1} parent=1 // pred_region
      _
    $region13: #{tpu_custom_call.1} parent=1 // pred_fallthru
      _
    %v15 = vld [vmem:[%s0] sm:$0xff]
    %v16 = vld [vmem:[%s0 + $0x8] sm:$0xff]
    %v17 = vld [vmem:[%s1] sm:$0xff]
    %19 = vset.pattern.permute.xlu0 0
    %20 = vperm.xlu0 %19, %v17
    %v21 = vpop.permute.xlu0 %20
    %v23 = vmul.f32 %v15, %v21
    %v24 = vmul.f32 %v16, %v21
    %v25 = vld [vmem:[%s2] sm:$0xff]
    %27 = vset.pattern.permute.xlu0 0
    %28 = vperm.xlu0 %27, %v25
    %v29 = vpop.permute.xlu0 %28
    %v31 = vadd.f32 %v23, %v29
    %v32 = vadd.f32 %v24, %v29
    %33 = vst [vmem:[#allocation2] sm:$0xff] %v31
    %34 = vst [vmem:[#allocation2 + $0x8] sm:$0xff] %v32
    // Predicated region
    $region14: #{tpu_custom_call.1} parent=1 // pred_check
      _
    $region15: #{tpu_custom_call.1} parent=1 // pred_check_branch
      %36 = sbr.rel (0) target = $region17
    $region16: #{tpu_custom_call.1} parent=1 // pred_region
      %s38 = ssub.s32 256, 256
      %39 = vsyncadd [#allocation3], %s38
      %s41 = sshll.u32 [#allocation2], 4
      %s42 = int_to_ptr.vmem [resolvable:$true] %s41
      %44 = dma.vmem_to_hbm [thread:$0]  %s42, 256, %s3, [#allocation3]
    $region17: #{tpu_custom_call.1} parent=1 // pred_fallthru
      _
    // Predicated region
    $region18: #{tpu_custom_call.1} parent=1 // pred_check
      _
    $region19: #{tpu_custom_call.1} parent=1 // pred_check_branch
      %46 = sbr.rel (0) target = $region21
    $region20: #{tpu_custom_call.1} parent=1 // pred_region
      %47 = dma.done [#allocation3], 256
    $region21: #{tpu_custom_call.1} parent=1 // pred_fallthru
      _
    %48 = vsyncpa [#allocation3], 1

</llo_original>
